<compile_context>
chip_gen: v7x
topology: tpu7x:2x2x1
jax: 0.10.0
libtpu: 0.0.40
codegen_flags: <defaults>
</compile_context>

<pallas_src>
import jax
import jax.numpy as jnp
from jax.experimental import pallas as pl
from jax.experimental.pallas import tpu as pltpu


def self_attn_kernel(x_ref, w_ref, len_ref, rep_ref, attn_ref):
    """One grid step handles TB batch elements.

    x_ref    : VMEM (TB, L, H) f32
    w_ref    : VMEM (1, H)     f32   attention weight row vector
    len_ref  : VMEM (TB, 1)    i32   sequence lengths
    rep_ref  : VMEM (TB, H)    f32   output representations (lane = H)
    attn_ref : VMEM (TB, L)    f32   output attention weights (lane = L)
    """
    x = x_ref[...]                                    # (TB, L, H)
    w = w_ref[...]                                    # (1, H)
    lens = len_ref[...]                               # (TB, 1) int32

    # scores on the VPU: broadcast multiply + reduce over the lane (H) axis.
    scores = jnp.sum(x * w[None, :, :], axis=-1)      # (TB, L)
    scores = jnp.maximum(scores, 0.0)                 # ReLU

    tb, L = scores.shape
    pos = jax.lax.broadcasted_iota(jnp.int32, (tb, L), 1)
    valid = pos < lens                                # (TB, L), broadcast over L

    # Length-masked softmax; identical to softmax -> mask -> renormalize.
    s_masked = jnp.where(valid, scores, -jnp.inf)
    m = jnp.max(s_masked, axis=-1, keepdims=True)     # (TB, 1)
    p = jnp.where(valid, jnp.exp(scores - m), 0.0)    # (TB, L)
    denom = jnp.sum(p, axis=-1, keepdims=True)        # (TB, 1)
    # Guard all-masked rows (length == 0): emit zeros instead of NaN.
    denom = jnp.where(denom > 0.0, denom, 1.0)
    attn = p / denom                                  # (TB, L)

    attn_ref[...] = attn
    # rep = sum over the sequence axis of x weighted by attn.
    rep_ref[...] = jnp.sum(x * attn[:, :, None], axis=1)   # (TB, H)


def _choose_batch_tile(B, L, H, target_bytes=4 * 1024 * 1024):
    """Pick TB (batch elements per grid step).

    Aim for a few MiB of x per step. Keep TB == B for small problems;
    otherwise round to a multiple of 8 so the (TB, H)/(TB, L) output blocks
    stay sublane-aligned.
    """
    per_elem = L * H * 4
    tb = max(1, target_bytes // max(per_elem, 1))
    if tb >= B:
        return B
    tb = max(8, tb // 8 * 8)
    # TODO(synk): for extremely long sequences (single (L, H) slab >> 4 MiB)
    # an additional L-tiling pass would be needed to bound VMEM.
    return min(tb, B)


def self_attention_a(x, att_weights, lengths):
    """x: (B, L, H) f32; att_weights: (1, H) f32; lengths: (B,) int32.

    Returns (representations (B, H), attentions (B, L)).
    """
    B, L, H = x.shape
    tb = _choose_batch_tile(B, L, H)
    grid = (pl.cdiv(B, tb),)

    w_row = att_weights.reshape(1, H).astype(jnp.float32)
    lens2d = lengths.astype(jnp.int32).reshape(B, 1)

    rep, attn = pl.pallas_call(
        self_attn_kernel,
        out_shape=(
            jax.ShapeDtypeStruct((B, H), jnp.float32),
            jax.ShapeDtypeStruct((B, L), jnp.float32),
        ),
        grid=grid,
        in_specs=[
            pl.BlockSpec((tb, L, H), lambda b: (b, 0, 0)),
            pl.BlockSpec((1, H), lambda b: (0, 0)),
            pl.BlockSpec((tb, 1), lambda b: (b, 0)),
        ],
        out_specs=[
            pl.BlockSpec((tb, H), lambda b: (b, 0)),
            pl.BlockSpec((tb, L), lambda b: (b, 0)),
        ],
        compiler_params=pltpu.CompilerParams(
            dimension_semantics=("parallel",),
            vmem_limit_bytes=48 * 1024 * 1024,
        ),
    )(x.astype(jnp.float32), w_row, lens2d)
    return rep, attn


def _reference(x, att_weights, lengths):
    """Pure-JAX reference of the PyTorch forward (softmax -> mask -> renorm)."""
    B, L, H = x.shape
    scores = jnp.einsum("blh,kh->bl", x, att_weights)            # (B, L)
    scores = jnp.maximum(scores, 0.0)
    attn = jax.nn.softmax(scores, axis=-1)
    mask = (jnp.arange(L)[None, :] < lengths[:, None]).astype(jnp.float32)
    masked = attn * mask
    attn = masked / masked.sum(-1, keepdims=True)
    rep = (x * attn[..., None]).sum(axis=1)
    return rep, attn


if __name__ == "__main__":
    B, L, H = 2, 8, 32
    key = jax.random.PRNGKey(0)
    kx, kw = jax.random.split(key)

    x = jax.random.normal(kx, (B, L, H), dtype=jnp.float32)

    # xavier_uniform for att_weights of shape (1, H): bound = sqrt(6 / (fan_in + fan_out))
    bound = (6.0 / (H + 1)) ** 0.5
    att_weights = jax.random.uniform(kw, (1, H), dtype=jnp.float32,
                                     minval=-bound, maxval=bound)

    lengths = jnp.array([L, 5], dtype=jnp.int32)   # second sequence padded past position 5

    rep, attn = self_attention_a(x, att_weights, lengths)
    rep = jax.block_until_ready(rep)
    attn = jax.block_until_ready(attn)

    rep_ref, attn_ref = _reference(x, att_weights, lengths)
    assert rep.shape == (B, H) and attn.shape == (B, L)
    assert jnp.allclose(rep, rep_ref, atol=1e-5, rtol=1e-5), "representations mismatch"
    assert jnp.allclose(attn, attn_ref, atol=1e-5, rtol=1e-5), "attentions mismatch"

    print("KERNEL_OK")
</pallas_src>

<mosaic_0001>
module attributes {stable_mosaic.version = 11 : i64} {
  func.func @self_attn_kernel(%arg0: i32, %arg1: memref<2x8x32xf32, #tpu.memory_space<vmem>>, %arg2: memref<1x32xf32, #tpu.memory_space<vmem>>, %arg3: memref<2x1xi32, #tpu.memory_space<vmem>>, %arg4: memref<2x32xf32, #tpu.memory_space<vmem>>, %arg5: memref<2x8xf32, #tpu.memory_space<vmem>>) attributes {dimension_semantics = [#tpu.dimension_semantics<parallel>], iteration_bounds = array<i64: 1>, scalar_prefetch = 0 : i64, scratch_operands = 0 : i64, tpu.core_type = #tpu.core_type<tc>, window_params = [{transform_indices = @transform_0, window_bounds = array<i64: 2, 8, 32>}, {pipeline_mode = #tpu.pipeline_mode<synchronous>, transform_indices = @transform_1, window_bounds = array<i64: 1, 32>}, {transform_indices = @transform_2, window_bounds = array<i64: 2, 1>}, {transform_indices = @transform_3, window_bounds = array<i64: 2, 32>}, {transform_indices = @transform_4, window_bounds = array<i64: 2, 8>}]} {
    %c0 = arith.constant 0 : index
    %c0_0 = arith.constant 0 : index
    %c0_1 = arith.constant 0 : index
    %0 = vector.load %arg1[%c0, %c0_0, %c0_1] : memref<2x8x32xf32, #tpu.memory_space<vmem>>, vector<2x8x32xf32>
    %c0_2 = arith.constant 0 : index
    %c0_3 = arith.constant 0 : index
    %1 = vector.load %arg2[%c0_2, %c0_3] : memref<1x32xf32, #tpu.memory_space<vmem>>, vector<1x32xf32>
    %c0_4 = arith.constant 0 : index
    %c0_5 = arith.constant 0 : index
    %2 = vector.load %arg3[%c0_4, %c0_5] : memref<2x1xi32, #tpu.memory_space<vmem>>, vector<2x1xi32>
    %3 = vector.shape_cast %1 : vector<1x32xf32> to vector<1x1x32xf32>
    %4 = vector.broadcast %3 : vector<1x1x32xf32> to vector<2x8x32xf32>
    %5 = arith.mulf %0, %4 : vector<2x8x32xf32>
    %cst = arith.constant dense<0.000000e+00> : vector<2x8xf32>
    %6 = vector.multi_reduction <add>, %5, %cst [2] : vector<2x8x32xf32> to vector<2x8xf32>
    %cst_6 = arith.constant 0.000000e+00 : f32
    %7 = vector.broadcast %cst_6 : f32 to vector<2x8xf32>
    %8 = arith.maximumf %6, %7 : vector<2x8xf32>
    %9 = tpu.iota {dimensions = array<i32: 1>} : vector<2x8xi32>
    %10 = vector.broadcast %2 : vector<2x1xi32> to vector<2x8xi32>
    %11 = arith.cmpi slt, %9, %10 : vector<2x8xi32>
    %cst_7 = arith.constant 0xFF800000 : f32
    %12 = vector.broadcast %cst_7 : f32 to vector<2x8xf32>
    %13 = arith.select %11, %8, %12 : vector<2x8xi1>, vector<2x8xf32>
    %cst_8 = arith.constant dense<0xFF800000> : vector<2xf32>
    %14 = vector.multi_reduction <maximumf>, %13, %cst_8 [1] : vector<2x8xf32> to vector<2xf32>
    %15 = vector.shape_cast %14 : vector<2xf32> to vector<2x1xf32>
    %16 = vector.broadcast %15 : vector<2x1xf32> to vector<2x8xf32>
    %17 = arith.subf %8, %16 : vector<2x8xf32>
    %18 = math.exp %17 : vector<2x8xf32>
    %cst_9 = arith.constant 0.000000e+00 : f32
    %19 = vector.broadcast %cst_9 : f32 to vector<2x8xf32>
    %20 = arith.select %11, %18, %19 : vector<2x8xi1>, vector<2x8xf32>
    %cst_10 = arith.constant dense<0.000000e+00> : vector<2xf32>
    %21 = vector.multi_reduction <add>, %20, %cst_10 [1] : vector<2x8xf32> to vector<2xf32>
    %22 = vector.shape_cast %21 : vector<2xf32> to vector<2x1xf32>
    %cst_11 = arith.constant 0.000000e+00 : f32
    %23 = vector.broadcast %cst_11 : f32 to vector<2x1xf32>
    %24 = arith.cmpf ogt, %22, %23 : vector<2x1xf32>
    %cst_12 = arith.constant 1.000000e+00 : f32
    %25 = vector.broadcast %cst_12 : f32 to vector<2x1xf32>
    %26 = arith.select %24, %22, %25 : vector<2x1xi1>, vector<2x1xf32>
    %27 = vector.broadcast %26 : vector<2x1xf32> to vector<2x8xf32>
    %28 = arith.divf %20, %27 : vector<2x8xf32>
    %c0_13 = arith.constant 0 : index
    %c0_14 = arith.constant 0 : index
    %29 = vector.load %arg5[%c0_13, %c0_14] : memref<2x8xf32, #tpu.memory_space<vmem>>, vector<2x8xf32>
    tpu.vector_store %arg5[%c0_13, %c0_14], %28 {strides = array<i32>} : memref<2x8xf32, #tpu.memory_space<vmem>>, vector<2x8xf32>,
    %30 = vector.shape_cast %28 : vector<2x8xf32> to vector<2x8x1xf32>
    %31 = vector.broadcast %30 : vector<2x8x1xf32> to vector<2x8x32xf32>
    %32 = arith.mulf %0, %31 : vector<2x8x32xf32>
    %cst_15 = arith.constant dense<0.000000e+00> : vector<2x32xf32>
    %33 = vector.multi_reduction <add>, %32, %cst_15 [1] : vector<2x8x32xf32> to vector<2x32xf32>
    %c0_16 = arith.constant 0 : index
    %c0_17 = arith.constant 0 : index
    %34 = vector.load %arg4[%c0_16, %c0_17] : memref<2x32xf32, #tpu.memory_space<vmem>>, vector<2x32xf32>
    tpu.vector_store %arg4[%c0_16, %c0_17], %33 {strides = array<i32>} : memref<2x32xf32, #tpu.memory_space<vmem>>, vector<2x32xf32>,
    return
  }
  func.func @transform_0(%arg0: i32) -> (i32, i32, i32) {
    %c0_i32 = arith.constant 0 : i32
    %c0_i32_0 = arith.constant 0 : i32
    %c0_i32_1 = arith.constant 0 : i32
    return %arg0, %c0_i32, %c0_i32_0 : i32, i32, i32
  }
  func.func @transform_1(%arg0: i32) -> (i32, i32) {
    %c0_i32 = arith.constant 0 : i32
    %c0_i32_0 = arith.constant 0 : i32
    %c0_i32_1 = arith.constant 0 : i32
    return %c0_i32, %c0_i32_0 : i32, i32
  }
  func.func @transform_2(%arg0: i32) -> (i32, i32) {
    %c0_i32 = arith.constant 0 : i32
    %c0_i32_0 = arith.constant 0 : i32
    return %arg0, %c0_i32 : i32, i32
  }
  func.func @transform_3(%arg0: i32) -> (i32, i32) {
    %c0_i32 = arith.constant 0 : i32
    %c0_i32_0 = arith.constant 0 : i32
    return %arg0, %c0_i32 : i32, i32
  }
  func.func @transform_4(%arg0: i32) -> (i32, i32) {
    %c0_i32 = arith.constant 0 : i32
    %c0_i32_0 = arith.constant 0 : i32
    return %arg0, %c0_i32 : i32, i32
  }
}

</mosaic_0001>

<llo_original>
// kernel: tpu_custom_call.1
$region0: #{tpu_custom_call.1}
  #allocation0 [shape = 'u32[]', space=smem, size = 0x4, offset = 0x4, fixed_abs, tag = 'smem constant byte address 0x4 - core index']
  #allocation1 [shape = 'u32[144,128]{1,0:T(1,128)}', space=vmem, size = 0x12000, scoped, tag = 'internal scratch']
  %s0 = inlined_call_operand.hbm [shape: f32[2,8,32], index: 0, kind: input, shape index: {}]
  %s1 = inlined_call_operand.vmem [shape: f32[1,32], index: 1, kind: input, shape index: {}]
  %s2 = inlined_call_operand.vmem [shape: s32[2,1], index: 2, kind: input, shape index: {}]
  %s3 = inlined_call_operand.hbm [shape: f32[2,32], index: 3, kind: output, shape index: {0}]
  %s4 = inlined_call_operand.hbm [shape: f32[2,8], index: 4, kind: output, shape index: {1}]
  %5 = xla_tuple %s3, %s4
  %s6 = sld [smem:[#allocation0]]
  $region34: #{tpu_custom_call.1} parent=0
    _
  %s8 = ssub.s32 1, %s6
  %s9 = scalar_select 0, %s8, %s6
  $region1: #{tpu_custom_call.1} parent=0
    #allocation2 [shape = 'u8[8192]{0}', space=vmem, size = 0x2000, scoped, tag = 'input window, operand 0, single buffered']
    #allocation3 [shape = 's32[1]{0}', space=sflag, size = 0x4, scoped, tag = 'scoped memory for tpu_custom_call.1']
    #allocation4 [shape = 's32[1]{0}', space=sflag, size = 0x4, scoped, tag = 'scoped memory for tpu_custom_call.1']
    #allocation5 [shape = 'u8[1024]{0}', space=vmem, size = 0x400, scoped, tag = 'output window, operand 0, single buffered']
    #allocation6 [shape = 'u8[1024]{0}', space=vmem, size = 0x400, scoped, tag = 'output window, operand 1, single buffered']
    #allocation7 [shape = 's32[1]{0}', space=sflag, size = 0x4, scoped, tag = 'scoped memory for tpu_custom_call.1']
    %10 = vsyncpa [#allocation3], 0
    %11 = vsyncpa [#allocation4], 0
    %12 = vsyncpa [#allocation7], 0
    // Predicated region
    $region2: #{tpu_custom_call.1} parent=1 // pred_check
      _
    $region3: #{tpu_custom_call.1} parent=1 // pred_check_branch
      %14 = sbr.rel (0) target = $region5
    $region4: #{tpu_custom_call.1} parent=1 // pred_region
      %s16 = ssub.s32 256, 256
      %17 = vsyncadd [#allocation3], %s16
      %s18 = sshll.u32 [#allocation2], 4
      %s19 = int_to_ptr.vmem [resolvable:$true] %s18
      %24 = dma.hbm_to_vmem [thread:$0]  %s0, 256, %s19, [#allocation3], 128, 128, 8
    $region5: #{tpu_custom_call.1} parent=1 // pred_fallthru
      _
    // Predicated region
    $region6: #{tpu_custom_call.1} parent=1 // pred_check
      _
    $region7: #{tpu_custom_call.1} parent=1 // pred_check_branch
      %26 = sbr.rel (0) target = $region9
    $region8: #{tpu_custom_call.1} parent=1 // pred_region
      _
    $region9: #{tpu_custom_call.1} parent=1 // pred_fallthru
      _
    // Predicated region
    $region10: #{tpu_custom_call.1} parent=1 // pred_check
      _
    $region11: #{tpu_custom_call.1} parent=1 // pred_check_branch
      %28 = sbr.rel (0) target = $region13
    $region12: #{tpu_custom_call.1} parent=1 // pred_region
      _
    $region13: #{tpu_custom_call.1} parent=1 // pred_fallthru
      _
    // Predicated region
    $region14: #{tpu_custom_call.1} parent=1 // pred_check
      _
    $region15: #{tpu_custom_call.1} parent=1 // pred_check_branch
      %30 = sbr.rel (0) target = $region17
    $region16: #{tpu_custom_call.1} parent=1 // pred_region
      %31 = dma.done [#allocation3], 256
    $region17: #{tpu_custom_call.1} parent=1 // pred_fallthru
      _
    %v32 = vld [vmem:[#allocation2] sm:$0xff]
    %v33 = vld [vmem:[#allocation2 + $0x8] sm:$0xff]
    %v34 = vld [vmem:[%s1] sm:$0x1]
    %v35 = vld [vmem:[%s2] sm:$0x3]
    %v37 = vlaneseq
    %v38 = vshrl.u32 %v37, 7
    %v39 = vsub.s32 0, %v38
    %v40 = vrot.slane %v34, %v39
    %v42 = vmul.f32 %v32, %v40
    %v43 = vmul.f32 %v33, %v40
    %vm44 = vcmask 261120
    %v45 = vsel %vm44, %v42, 0.0
    %46 = vadd.xlane.f32.xlu0 %v45
    %v47 = vpop.xlane.xlu0 %46
    %v48 = vsel %vm44, %v43, 0.0
    %49 = vadd.xlane.f32.xlu0 %v48
    %v50 = vpop.xlane.xlu0 %49
    %v51 = vmax.f32 %v47, 0.0
    %v52 = vmax.f32 %v50, 0.0
    %v53 = vlaneseq
    %v54 = vand.u32 %v53, 127
    %55 = vset.pattern.permute.xlu0 0
    %56 = vperm.xlu0 %55, %v35
    %v57 = vpop.permute.xlu0 %56
    %vm58 = vcmp.lt.s32.totalorder %v54, %v57
    %v61 = vlaneseq
    %v62 = vshrl.u32 %v61, 7
    %v63 = vsub.s32 %v54, %v62
    %v64 = vrot.slane %v51, %v63
    %v65 = vlaneseq
    %v66 = vshrl.u32 %v65, 7
    %v67 = vsub.s32 %v54, %v66
    %v68 = vrot.slane %v52, %v67
    %vm69 = vcmask 1041409
    %v70 = vsel %vm69, %v68, %v64
    %v72 = vsel %vm58, %v70, -inf
    %vm73 = vcmask 58368
    %v74 = vsel %vm73, %v72, -inf
    %75 = vmax.xlane.f32.xlu0 %v74
    %v76 = vpop.xlane.xlu0 %75
    %v78 = vlaneseq
    %v79 = vshrl.u32 %v78, 7
    %v80 = vsub.s32 0, %v79
    %v81 = vrot.slane %v76, %v80
    %v82 = vlaneseq
    %v83 = vshrl.u32 %v82, 7
    %v84 = vsub.s32 1, %v83
    %v85 = vrot.slane %v76, %v84
    %v88 = vsub.f32 %v51, %v81
    %v89 = vsub.f32 %v52, %v85
    %v90 = vmul.f32 %v88, 1.442695
    %v91 = vpow.pop %v90
    %v92 = vmul.f32 %v89, 1.442695
    %v93 = vpow.pop %v92
    %96 = vset.pattern.permute.xlu0 0
    %97 = vperm.xlu0 %96, %v91
    %v98 = vpop.permute.xlu0 %97
    %99 = vset.pattern.permute.xlu0 0
    %100 = vperm.xlu0 %99, %v93
    %v101 = vpop.permute.xlu0 %100
    %v102 = vlaneseq
    %v103 = vshrl.u32 %v102, 7
    %v104 = vsub.s32 %v54, %v103
    %v105 = vrot.slane %v98, %v104
    %v106 = vlaneseq
    %v107 = vshrl.u32 %v106, 7
    %v108 = vsub.s32 %v54, %v107
    %v109 = vrot.slane %v101, %v108
    %v110 = vsel %vm69, %v109, %v105
    %v112 = vsel %vm58, %v110, 0.0
    %v113 = vsel %vm73, %v112, 0.0
    %114 = vadd.xlane.f32.xlu0 %v113
    %v115 = vpop.xlane.xlu0 %114
    %vm116 = vcmp.gt.f32.partialorder %v115, 0.0
    %v117 = vsel %vm116, %v115, 1.0
    %v118 = vrcp.pop %v117
    %v119 = vmul.f32 %v112, %v118
    %120 = vst.msk [vmem:[#allocation6] sm:$0x3] %vm73, %v119
    %v121 = vlaneseq
    %v122 = vshrl.u32 %v121, 7
    %v123 = vsub.s32 0, %v122
    %v124 = vrot.slane %v119, %v123
    %126 = vbcast.lane.b32.xlu0 %v124, 256
    %v127 = vpop.permute.xlu0 %126
    %v128 = vlaneseq
    %v129 = vshrl.u32 %v128, 7
    %v130 = vsub.s32 1, %v129
    %v131 = vrot.slane %v119, %v130
    %133 = vbcast.lane.b32.xlu0 %v131, 256
    %v134 = vpop.permute.xlu0 %133
    %v135 = vmul.f32 %v32, %v127
    %v136 = vmul.f32 %v33, %v134
    %v137 = vsel %vm44, %v135, 0.0
    %v138 = vrot.slane %v137, 4
    %v139 = vadd.f32 %v137, %v138
    %v140 = vrot.slane %v139, 2
    %v141 = vadd.f32 %v139, %v140
    %v142 = vrot.slane %v141, 1
    %v143 = vadd.f32 %v141, %v142
    %v144 = vsel %vm44, %v136, 0.0
    %v145 = vrot.slane %v144, 4
    %v146 = vadd.f32 %v144, %v145
    %v147 = vrot.slane %v146, 2
    %v148 = vadd.f32 %v146, %v147
    %v149 = vrot.slane %v148, 1
    %v150 = vadd.f32 %v148, %v149
    %v153 = vsel %vm69, %v150, %v143
    %vm155 = vcmask 254976
    %156 = vst.msk [vmem:[#allocation5] sm:$0x3] %vm155, %v153
    // Predicated region
    $region18: #{tpu_custom_call.1} parent=1 // pred_check
      _
    $region19: #{tpu_custom_call.1} parent=1 // pred_check_branch
      %158 = sbr.rel (0) target = $region21
    $region20: #{tpu_custom_call.1} parent=1 // pred_region
      %s160 = ssub.s32 32, 32
      %161 = vsyncadd [#allocation4], %s160
      %s163 = sshll.u32 [#allocation5], 4
      %s164 = int_to_ptr.vmem [resolvable:$true] %s163
      %166 = dma.vmem_to_hbm [thread:$0]  %s164, 32, %s3, [#allocation4]
    $region21: #{tpu_custom_call.1} parent=1 // pred_fallthru
      _
    // Predicated region
    $region22: #{tpu_custom_call.1} parent=1 // pred_check
      _
    $region23: #{tpu_custom_call.1} parent=1 // pred_check_branch
      %168 = sbr.rel (0) target = $region25
    $region24: #{tpu_custom_call.1} parent=1 // pred_region
      %s170 = ssub.s32 32, 32
      %171 = vsyncadd [#allocation7], %s170
      %s173 = sshll.u32 [#allocation6], 4
      %s174 = int_to_ptr.vmem [resolvable:$true] %s173
      %176 = dma.vmem_to_hbm [thread:$0]  %s174, 32, %s4, [#allocation7]
    $region25: #{tpu_custom_call.1} parent=1 // pred_fallthru
      _
    // Predicated region
    $region26: #{tpu_custom_call.1} parent=1 // pred_check
      _
    $region27: #{tpu_custom_call.1} parent=1 // pred_check_branch
      %178 = sbr.rel (0) target = $region29
    $region28: #{tpu_custom_call.1} parent=1 // pred_region
      %179 = dma.done [#allocation4], 32
    $region29: #{tpu_custom_call.1} parent=1 // pred_fallthru
      _
    // Predicated region
    $region30: #{tpu_custom_call.1} parent=1 // pred_check
      _
    $region31: #{tpu_custom_call.1} parent=1 // pred_check_branch
      %181 = sbr.rel (0) target = $region33
    $region32: #{tpu_custom_call.1} parent=1 // pred_region
      %182 = dma.done [#allocation7], 32
    $region33: #{tpu_custom_call.1} parent=1 // pred_fallthru
      _
    %183 = vsyncpa [#allocation3], 1
    %184 = vsyncpa [#allocation4], 1
    %185 = vsyncpa [#allocation7], 1

</llo_original>
